<compile_context>
chip_gen: v6e
topology: v6e:2x2x1
jax: 0.10.0
libtpu: 0.0.40
codegen_flags: <defaults>
</compile_context>

<pallas_src>
import functools

import jax
import jax.numpy as jnp
from jax import lax
from jax.experimental import pallas as pl
from jax.experimental.pallas import tpu as pltpu

LANES = 128
SUBLANES = 8


def _round_up(x, m):
    return ((x + m - 1) // m) * m


def _chip_params():
    """Generation-dependent tiling / core-split parameters."""
    try:
        kind = jax.devices()[0].device_kind.lower()
    except Exception:
        kind = ""
    if "v7" in kind:
        # 2 TensorCores / chip, 3.2 TB/s HBM: big tiles + split across cores.
        return {"max_row_tile": 8192, "num_partials": 2, "core_parallel": True}
    if "v6" in kind:
        # 1 TC, 32 MiB scoped-VMEM default: 8192x128 f32 blocks (4 MiB) fit
        # with double buffering (2 inputs x 2 buffers = 16 MiB).
        return {"max_row_tile": 8192, "num_partials": 1, "core_parallel": False}
    # v5e / older / unknown: 16 MiB scoped-VMEM default -> cap at 4096 rows
    # (2 inputs x 2 buffers x 2 MiB = 8 MiB).
    return {"max_row_tile": 4096, "num_partials": 1, "core_parallel": False}


def _l1_partial_kernel(a_ref, b_ref, o_ref, *, row_tile, valid_rows,
                       tiles_per_core, needs_mask):
    c = pl.program_id(0)   # partial-sum / core index
    i = pl.program_id(1)   # streaming reduction index ('arbitrary')

    # o_ref is a (1, 8, 128) f32 block resident across the i axis (its block
    # index depends only on c): the accumulator for this partial.
    @pl.when(i == 0)
    def _():
        o_ref[...] = jnp.zeros_like(o_ref)

    d = jnp.abs(a_ref[...].astype(jnp.float32) - b_ref[...].astype(jnp.float32))

    def _accum(x):
        # Pure VPU adds: collapse the tile sublane-group-wise into one vreg
        # and accumulate into the resident output block (no per-step XLU).
        o_ref[...] += x.reshape(row_tile // SUBLANES, SUBLANES, LANES).sum(
            axis=0, keepdims=True)

    if needs_mask:
        # Logical (unclamped) tile position; only partial / phantom tiles pay
        # for the iota + select, fully-valid tiles stay on the cheap path.
        row_base = (c * tiles_per_core + i) * row_tile
        is_full = row_base + row_tile <= valid_rows

        @pl.when(is_full)
        def _():
            _accum(d)

        @pl.when(jnp.logical_not(is_full))
        def _():
            row_ids = row_base + lax.broadcasted_iota(
                jnp.int32, (row_tile, 1), 0)
            _accum(jnp.where(row_ids < valid_rows, d, 0.0))
    else:
        _accum(d)


def split_loss(out_images, target_images, *, min_kernel_bytes=2 << 20,
               max_row_tile=None):
    """Equivalent of SplitLoss.forward: mean(|out - target|) over all elements."""
    assert out_images.shape == target_images.shape
    dtype = out_images.dtype
    n_elems = out_images.size
    if n_elems == 0:
        # Matches torch.nn.L1Loss(reduction='mean') on empty tensors (NaN).
        return jnp.asarray(jnp.nan, dtype)

    a_flat = out_images.reshape(-1)
    b_flat = target_images.reshape(-1)
    itemsize = jnp.dtype(dtype).itemsize
    total_bytes = 2 * n_elems * itemsize

    # Fast path: tiny inputs (launch/pipeline overhead dominates) or element
    # counts that are not lane-aligned (a zero-copy (rows, 128) view is then
    # impossible; padding/slicing would re-copy both inputs in HBM, while
    # XLA's fused abs-diff-reduce already runs at HBM roofline).
    if (n_elems % LANES != 0) or (total_bytes < min_kernel_bytes):
        diff = jnp.abs(a_flat.astype(jnp.float32) - b_flat.astype(jnp.float32))
        return jnp.mean(diff).astype(dtype)

    params = _chip_params()
    if max_row_tile is None:
        max_row_tile = params["max_row_tile"]

    rows = n_elems // LANES
    a2d = a_flat.reshape(rows, LANES)   # contiguous reshape: no HBM copy
    b2d = b_flat.reshape(rows, LANES)

    # Dtype-dependent sublane packing: f32 -> 8, bf16 -> 16, int8/fp8 -> 32.
    spack = max(SUBLANES, 32 // itemsize)
    row_tile = min(_round_up(max_row_tile, spack), _round_up(rows, spack))

    num_tiles = pl.cdiv(rows, row_tile)
    num_partials = min(params["num_partials"], num_tiles)
    tiles_per_core = pl.cdiv(num_tiles, num_partials)
    needs_mask = (tiles_per_core * num_partials * row_tile) != rows

    def in_map(c, i):
        # Clamp so the auto-DMA never targets a block fully outside the array
        # (phantom tiles on the core-split axis); the in-kernel mask zeroes
        # those tiles so duplicated data never contributes.
        return (jnp.minimum(c * tiles_per_core + i, num_tiles - 1), 0)

    kernel = functools.partial(
        _l1_partial_kernel,
        row_tile=row_tile,
        valid_rows=rows,
        tiles_per_core=tiles_per_core,
        needs_mask=needs_mask,
    )

    cost = pl.CostEstimate(
        flops=3 * n_elems,                       # sub + abs + add per element
        transcendentals=0,
        bytes_accessed=2 * n_elems * itemsize,   # pure streaming read
    )

    def run(leading_sem):
        return pl.pallas_call(
            kernel,
            out_shape=jax.ShapeDtypeStruct(
                (num_partials, SUBLANES, LANES), jnp.float32),
            grid_spec=pltpu.PrefetchScalarGridSpec(
                num_scalar_prefetch=0,
                grid=(num_partials, tiles_per_core),
                in_specs=[
                    pl.BlockSpec((row_tile, LANES), in_map),
                    pl.BlockSpec((row_tile, LANES), in_map),
                ],
                out_specs=pl.BlockSpec((1, SUBLANES, LANES),
                                       lambda c, i: (c, 0, 0)),
            ),
            compiler_params=pltpu.CompilerParams(
                dimension_semantics=(leading_sem, pltpu.ARBITRARY)),
            cost_estimate=cost,
        )(a2d, b2d)

    if num_partials > 1 and params["core_parallel"]:
        # v7x: actually shard the leading partial axis across the 2 TCs.
        try:
            partials = run(pltpu.CORE_PARALLEL)
        except Exception:
            # TODO(synk): fallback if this build rejects CORE_PARALLEL here.
            partials = run(pltpu.PARALLEL)
    else:
        partials = run(pltpu.PARALLEL)

    # Tiny final reduction (num_partials x 8 x 128) + global mean in plain JAX.
    total = jnp.sum(partials)
    return (total / jnp.float32(n_elems)).astype(dtype)


if __name__ == "__main__":
    key = jax.random.PRNGKey(0)
    k1, k2, k3, k4 = jax.random.split(key, 4)

    # 1) Small module-like input (lane-aligned); force the Pallas kernel path.
    a = jax.random.normal(k1, (2, 4, 16, 16), dtype=jnp.float32)
    b = jax.random.normal(k2, (2, 4, 16, 16), dtype=jnp.float32)
    loss = split_loss(a, b, min_kernel_bytes=0)
    jax.block_until_ready(loss)
    ref = jnp.mean(jnp.abs(a - b))
    assert jnp.allclose(loss, ref, rtol=1e-5, atol=1e-6), (loss, ref)

    # 2) Multi-tile + partial-last-tile path (small row-tile override so the
    #    gated mask and the clamped phantom-tile logic are exercised).
    a2 = jax.random.normal(k3, (2, 4, 17, 128), dtype=jnp.float32)  # rows=136
    b2 = jax.random.normal(k4, (2, 4, 17, 128), dtype=jnp.float32)
    loss2 = split_loss(a2, b2, min_kernel_bytes=0, max_row_tile=48)
    jax.block_until_ready(loss2)
    ref2 = jnp.mean(jnp.abs(a2 - b2))
    assert jnp.allclose(loss2, ref2, rtol=1e-4, atol=1e-6), (loss2, ref2)

    # 3) Default path: tiny + non-lane-aligned element count -> XLA fast path.
    k5, k6 = jax.random.split(k4)
    a3 = jax.random.normal(k5, (2, 3, 17, 19), dtype=jnp.float32)
    b3 = jax.random.normal(k6, (2, 3, 17, 19), dtype=jnp.float32)
    loss3 = split_loss(a3, b3)
    jax.block_until_ready(loss3)
    ref3 = jnp.mean(jnp.abs(a3 - b3))
    assert jnp.allclose(loss3, ref3, rtol=1e-5, atol=1e-6), (loss3, ref3)

    print("KERNEL_OK")
</pallas_src>

<mosaic_0001>
module attributes {stable_mosaic.version = 11 : i64} {
  func.func @_l1_partial_kernel(%arg0: i32, %arg1: i32, %arg2: memref<16x128xf32, #tpu.memory_space<vmem>>, %arg3: memref<16x128xf32, #tpu.memory_space<vmem>>, %arg4: memref<1x8x128xf32, #tpu.memory_space<vmem>>) attributes {dimension_semantics = [#tpu.dimension_semantics<parallel>, #tpu.dimension_semantics<arbitrary>], iteration_bounds = array<i64: 1, 1>, scalar_prefetch = 0 : i64, scratch_operands = 0 : i64, tpu.core_type = #tpu.core_type<tc>, window_params = [{transform_indices = @transform_0, window_bounds = array<i64: 16, 128>}, {transform_indices = @transform_1, window_bounds = array<i64: 16, 128>}, {transform_indices = @transform_2, window_bounds = array<i64: 1, 8, 128>}]} {
    %c0_i32 = arith.constant 0 : i32
    %0 = arith.cmpi eq, %arg1, %c0_i32 : i32
    %1 = arith.extui %0 : i1 to i32
    %c0_i32_0 = arith.constant 0 : i32
    %2 = arith.cmpi ne, %1, %c0_i32_0 : i32
    scf.if %2 {
      %cst_10 = arith.constant 0.000000e+00 : f32
      %13 = vector.broadcast %cst_10 : f32 to vector<1x8x128xf32>
      %c0_11 = arith.constant 0 : index
      %c0_12 = arith.constant 0 : index
      %c0_13 = arith.constant 0 : index
      %14 = vector.load %arg4[%c0_11, %c0_12, %c0_13] : memref<1x8x128xf32, #tpu.memory_space<vmem>>, vector<1x8x128xf32>
      tpu.vector_store %arg4[%c0_11, %c0_12, %c0_13], %13 {strides = array<i32>} : memref<1x8x128xf32, #tpu.memory_space<vmem>>, vector<1x8x128xf32>,
    } else {
    }
    %c0 = arith.constant 0 : index
    %c0_1 = arith.constant 0 : index
    %3 = vector.load %arg2[%c0, %c0_1] : memref<16x128xf32, #tpu.memory_space<vmem>>, vector<16x128xf32>
    %c0_2 = arith.constant 0 : index
    %c0_3 = arith.constant 0 : index
    %4 = vector.load %arg3[%c0_2, %c0_3] : memref<16x128xf32, #tpu.memory_space<vmem>>, vector<16x128xf32>
    %5 = arith.subf %3, %4 : vector<16x128xf32>
    %6 = math.absf %5 : vector<16x128xf32>
    %c0_4 = arith.constant 0 : index
    %c0_5 = arith.constant 0 : index
    %c0_6 = arith.constant 0 : index
    %7 = vector.load %arg4[%c0_4, %c0_5, %c0_6] : memref<1x8x128xf32, #tpu.memory_space<vmem>>, vector<1x8x128xf32>
    %8 = vector.shape_cast %6 : vector<16x128xf32> to vector<2x8x128xf32>
    %cst = arith.constant dense<0.000000e+00> : vector<8x128xf32>
    %9 = vector.multi_reduction <add>, %8, %cst [0] : vector<2x8x128xf32> to vector<8x128xf32>
    %10 = vector.shape_cast %9 : vector<8x128xf32> to vector<1x8x128xf32>
    %11 = arith.addf %7, %10 : vector<1x8x128xf32>
    %c0_7 = arith.constant 0 : index
    %c0_8 = arith.constant 0 : index
    %c0_9 = arith.constant 0 : index
    %12 = vector.load %arg4[%c0_7, %c0_8, %c0_9] : memref<1x8x128xf32, #tpu.memory_space<vmem>>, vector<1x8x128xf32>
    tpu.vector_store %arg4[%c0_7, %c0_8, %c0_9], %11 {strides = array<i32>} : memref<1x8x128xf32, #tpu.memory_space<vmem>>, vector<1x8x128xf32>,
    return
  }
  func.func @transform_0(%arg0: i32, %arg1: i32) -> (i32, i32) {
    %c1_i32 = arith.constant 1 : i32
    %0 = arith.muli %arg0, %c1_i32 : i32
    %1 = arith.addi %0, %arg1 : i32
    %c0_i32 = arith.constant 0 : i32
    %2 = arith.minsi %1, %c0_i32 : i32
    %c0_i32_0 = arith.constant 0 : i32
    %c0_i32_1 = arith.constant 0 : i32
    return %2, %c0_i32_0 : i32, i32
  }
  func.func @transform_1(%arg0: i32, %arg1: i32) -> (i32, i32) {
    %c1_i32 = arith.constant 1 : i32
    %0 = arith.muli %arg0, %c1_i32 : i32
    %1 = arith.addi %0, %arg1 : i32
    %c0_i32 = arith.constant 0 : i32
    %2 = arith.minsi %1, %c0_i32 : i32
    %c0_i32_0 = arith.constant 0 : i32
    %c0_i32_1 = arith.constant 0 : i32
    return %2, %c0_i32_0 : i32, i32
  }
  func.func @transform_2(%arg0: i32, %arg1: i32) -> (i32, i32, i32) {
    %c0_i32 = arith.constant 0 : i32
    %c0_i32_0 = arith.constant 0 : i32
    %c0_i32_1 = arith.constant 0 : i32
    return %arg0, %c0_i32, %c0_i32_0 : i32, i32, i32
  }
}

</mosaic_0001>

<llo_original>
// kernel: tpu_custom_call.1
$region0: #{tpu_custom_call.1}
  #allocation0 [shape = 'u32[]', space=smem, size = 0x4, offset = 0x4, fixed_abs, tag = 'smem constant byte address 0x4 - core index']
  #allocation1 [shape = 'u32[144,128]{1,0:T(1,128)}', space=vmem, size = 0x12000, scoped, tag = 'internal scratch']
  %s0 = inlined_call_operand.hbm [shape: f32[16,128], index: 0, kind: input, shape index: {}]
  %s1 = inlined_call_operand.hbm [shape: f32[16,128], index: 1, kind: input, shape index: {}]
  %s2 = inlined_call_operand.hbm [shape: f32[1,8,128], index: 2, kind: output, shape index: {}]
  %s3 = sld [smem:[#allocation0]]
  $region30: #{tpu_custom_call.1} parent=0
    _
  %s5 = ssub.s32 1, %s3
  %s6 = scalar_select 0, %s5, %s3
  $region1: #{tpu_custom_call.1} parent=0
    #allocation2 [shape = 'u8[8192]{0}', space=vmem, size = 0x2000, scoped, tag = 'input window, operand 0, single buffered']
    #allocation3 [shape = 's32[1]{0}', space=sflag, size = 0x4, scoped, tag = 'scoped memory for tpu_custom_call.1']
    #allocation4 [shape = 's32[1]{0}', space=sflag, size = 0x4, scoped, tag = 'scoped memory for tpu_custom_call.1']
    #allocation5 [shape = 'u8[8192]{0}', space=vmem, size = 0x2000, scoped, tag = 'input window, operand 1, single buffered']
    #allocation6 [shape = 's32[1]{0}', space=sflag, size = 0x4, scoped, tag = 'scoped memory for tpu_custom_call.1']
    #allocation7 [shape = 'u8[4096]{0}', space=vmem, size = 0x1000, scoped, tag = 'output window, operand 0, single buffered']
    %7 = vsyncpa [#allocation3], 0
    %8 = vsyncpa [#allocation6], 0
    %9 = vsyncpa [#allocation4], 0
    // Predicated region
    $region2: #{tpu_custom_call.1} parent=1 // pred_check
      _
    $region3: #{tpu_custom_call.1} parent=1 // pred_check_branch
      %11 = sbr.rel (0) target = $region5
    $region4: #{tpu_custom_call.1} parent=1 // pred_region
      %s12 = sadd.s32 0, 0
      %p13 = scmp.lt.s32.totalorder %s12, 0
      %s14 = scalar_select %p13, %s12, 0
      %s15 = smul.u32 2, %s14
      %s17 = ssub.s32 256, 256
      %18 = vsyncadd [#allocation3], %s17
      %s19 = smul.addr %s15, 128
      %s20 = scalar_lea.hbm %s0, %s19
      %s21 = sshll.u32 [#allocation2], 4
      %s22 = int_to_ptr.vmem [resolvable:$true] %s21
      %27 = dma.hbm_to_vmem [thread:$0]  %s20, 256, %s22, [#allocation3], 128, 128, 8
    $region5: #{tpu_custom_call.1} parent=1 // pred_fallthru
      _
    // Predicated region
    $region6: #{tpu_custom_call.1} parent=1 // pred_check
      _
    $region7: #{tpu_custom_call.1} parent=1 // pred_check_branch
      %29 = sbr.rel (0) target = $region9
    $region8: #{tpu_custom_call.1} parent=1 // pred_region
      %s30 = sadd.s32 0, 0
      %p31 = scmp.lt.s32.totalorder %s30, 0
      %s32 = scalar_select %p31, %s30, 0
      %s33 = smul.u32 2, %s32
      %s35 = ssub.s32 256, 256
      %36 = vsyncadd [#allocation6], %s35
      %s37 = smul.addr %s33, 128
      %s38 = scalar_lea.hbm %s1, %s37
      %s39 = sshll.u32 [#allocation5], 4
      %s40 = int_to_ptr.vmem [resolvable:$true] %s39
      %45 = dma.hbm_to_vmem [thread:$0]  %s38, 256, %s40, [#allocation6], 128, 128, 8
    $region9: #{tpu_custom_call.1} parent=1 // pred_fallthru
      _
    // Predicated region
    $region10: #{tpu_custom_call.1} parent=1 // pred_check
      _
    $region11: #{tpu_custom_call.1} parent=1 // pred_check_branch
      %47 = sbr.rel (0) target = $region13
    $region12: #{tpu_custom_call.1} parent=1 // pred_region
      %48 = dma.done [#allocation3], 256
    $region13: #{tpu_custom_call.1} parent=1 // pred_fallthru
      _
    // Predicated region
    $region14: #{tpu_custom_call.1} parent=1 // pred_check
      _
    $region15: #{tpu_custom_call.1} parent=1 // pred_check_branch
      %50 = sbr.rel (0) target = $region17
    $region16: #{tpu_custom_call.1} parent=1 // pred_region
      %51 = dma.done [#allocation6], 256
    $region17: #{tpu_custom_call.1} parent=1 // pred_fallthru
      _
    %s52 = sadd.s32 0, 0
    %p53 = scmp.lt.s32.totalorder %s52, 0
    %s54 = scalar_select %p53, %s52, 0
    %s55 = smul.u32 2, %s54
    %s56 = sadd.s32 0, 0
    %p57 = scmp.lt.s32.totalorder %s56, 0
    %s58 = scalar_select %p57, %s56, 0
    %s59 = smul.u32 2, %s58
    %p60 = scmp.eq.s32.totalorder 0, 0
    // Predicated region
    $region18: #{tpu_custom_call.1} parent=1 // pred_check
      %p61 = pneg %p60
    $region19: #{tpu_custom_call.1} parent=1 // pred_check_branch
      %63 = sbr.rel (%p61) target = $region21
    $region20: #{tpu_custom_call.1} parent=1 // pred_region
      %64 = vst [vmem:[#allocation7] sm:$0xff] 0.0
    $region21: #{tpu_custom_call.1} parent=1 // pred_fallthru
      _
    %v65 = vld [vmem:[#allocation2] sm:$0xff]
    %v66 = vld [vmem:[#allocation2 + $0x8] sm:$0xff]
    %v67 = vld [vmem:[#allocation5] sm:$0xff]
    %v68 = vld [vmem:[#allocation5 + $0x8] sm:$0xff]
    %v69 = vsub.f32 %v65, %v67
    %v70 = vsub.f32 %v66, %v68
    %v71 = vand.u32 2147483647, %v69
    %v72 = vand.u32 2147483647, %v70
    %v73 = vld [vmem:[#allocation7] sm:$0xff]
    %v74 = vadd.f32 %v71, %v72
    %v75 = vadd.f32 %v73, %v74
    %76 = vst [vmem:[#allocation7] sm:$0xff] %v75
    // Predicated region
    $region22: #{tpu_custom_call.1} parent=1 // pred_check
      _
    $region23: #{tpu_custom_call.1} parent=1 // pred_check_branch
      %78 = sbr.rel (0) target = $region25
    $region24: #{tpu_custom_call.1} parent=1 // pred_region
      %s80 = ssub.s32 128, 128
      %81 = vsyncadd [#allocation4], %s80
      %s83 = sshll.u32 [#allocation7], 4
      %s84 = int_to_ptr.vmem [resolvable:$true] %s83
      %86 = dma.vmem_to_hbm [thread:$0]  %s84, 128, %s2, [#allocation4]
    $region25: #{tpu_custom_call.1} parent=1 // pred_fallthru
      _
    // Predicated region
    $region26: #{tpu_custom_call.1} parent=1 // pred_check
      _
    $region27: #{tpu_custom_call.1} parent=1 // pred_check_branch
      %88 = sbr.rel (0) target = $region29
    $region28: #{tpu_custom_call.1} parent=1 // pred_region
      %89 = dma.done [#allocation4], 128
    $region29: #{tpu_custom_call.1} parent=1 // pred_fallthru
      _
    %90 = vsyncpa [#allocation3], 1
    %91 = vsyncpa [#allocation6], 1
    %92 = vsyncpa [#allocation4], 1

</llo_original>
